<compile_context>
chip_gen: v7x
topology: tpu7x:2x2x1
jax: 0.10.0
libtpu: 0.0.40
codegen_flags: <defaults>
</compile_context>

<pallas_src>
import jax
import jax.numpy as jnp
from jax import lax
from jax.experimental import pallas as pl
from jax.experimental.pallas import tpu as pltpu

IN_FEATURES = 1444
OUT_FEATURES = 250
DEFAULT_TILE_B = 512  # 2*(512*1444*4B) x-bufs + 1.44 MiB weight + out tiles ≈ 10 MiB VMEM


def _linear_kernel(x_ref, w_ref, o_ref):
    # x_ref: [tb, K] ; w_ref: [N, K] (PyTorch weight layout, contracted on last axis)
    # -> o_ref: [tb, N].  RHS-transposed matmul is consumed natively by the MXU.
    o_ref[...] = lax.dot_general(
        x_ref[...],
        w_ref[...],
        dimension_numbers=(((1,), (1,)), ((), ())),
        preferred_element_type=jnp.float32,
    ).astype(o_ref.dtype)


def meta_learner_forward(x, w1, *, tile_b=DEFAULT_TILE_B):
    """x: [B, 1444] float32.  w1: PyTorch-layout weight [250, 1444] float32.

    Returns logits [B, 250] = x @ w1.T  (bias-free Linear, matching forward()).
    """
    B, K = x.shape
    assert K == IN_FEATURES
    assert w1.shape == (OUT_FEATURES, IN_FEATURES)

    if B <= tile_b:
        tb = B            # single block == full dim -> (8,128) divisibility waived
        grid = (1,)
    else:
        assert tile_b % 8 == 0, "batch tile must be a sublane multiple"
        tb = tile_b
        grid = (pl.cdiv(B, tb),)  # partial last tile: writeback is masked by Pallas

    cost = pl.CostEstimate(
        flops=2 * B * IN_FEATURES * OUT_FEATURES,
        transcendentals=0,
        bytes_accessed=(B * IN_FEATURES + OUT_FEATURES * IN_FEATURES + B * OUT_FEATURES)
        * x.dtype.itemsize,
    )

    return pl.pallas_call(
        _linear_kernel,
        out_shape=jax.ShapeDtypeStruct((B, OUT_FEATURES), x.dtype),
        grid=grid,
        in_specs=[
            # x: tiled along batch, full (unpadded) feature axis.
            pl.BlockSpec((tb, IN_FEATURES), lambda i: (i, 0)),
            # weight: full array, constant block index -> stays resident in VMEM.
            pl.BlockSpec((OUT_FEATURES, IN_FEATURES), lambda i: (0, 0)),
        ],
        out_specs=pl.BlockSpec((tb, OUT_FEATURES), lambda i: (i, 0)),
        compiler_params=pltpu.CompilerParams(
            dimension_semantics=("parallel",),
        ),
        cost_estimate=cost,
    )(x, w1)


def init_params(key):
    """Deterministic init mirroring nn.Linear(1444, 250, bias=False) default:
    U(-1/sqrt(fan_in), 1/sqrt(fan_in)), weight shape [out, in]."""
    bound = 1.0 / jnp.sqrt(jnp.float32(IN_FEATURES))
    w1 = jax.random.uniform(
        key, (OUT_FEATURES, IN_FEATURES), jnp.float32, minval=-bound, maxval=bound
    )
    # NOTE: bn / act / l2 params exist in __init__ but are dead in the returned value;
    # they are intentionally not materialized here.
    return w1


if __name__ == "__main__":
    key = jax.random.PRNGKey(0)
    k_w, k_x1, k_x2 = jax.random.split(key, 3)

    w1 = init_params(k_w)

    # Small-batch case (single block, block shape == full array dims, no padding copies).
    B1 = 4
    x1 = jax.random.normal(k_x1, (B1, IN_FEATURES), jnp.float32)
    y1 = jax.block_until_ready(meta_learner_forward(x1, w1))
    ref1 = x1 @ w1.T
    assert y1.shape == (B1, OUT_FEATURES)
    assert jnp.allclose(y1, ref1, atol=2e-4, rtol=2e-4)

    # Tiled-batch case (grid > 1; weight block stays VMEM-resident across steps).
    B2 = 24
    x2 = jax.random.normal(k_x2, (B2, IN_FEATURES), jnp.float32)
    y2 = jax.block_until_ready(meta_learner_forward(x2, w1, tile_b=8))
    ref2 = x2 @ w1.T
    assert y2.shape == (B2, OUT_FEATURES)
    assert jnp.allclose(y2, ref2, atol=2e-4, rtol=2e-4)

    print("KERNEL_OK")
</pallas_src>

<mosaic_0001>
module attributes {stable_mosaic.version = 11 : i64} {
  func.func @_linear_kernel(%arg0: i32, %arg1: memref<4x1444xf32, #tpu.memory_space<vmem>>, %arg2: memref<250x1444xf32, #tpu.memory_space<vmem>>, %arg3: memref<4x250xf32, #tpu.memory_space<vmem>>) attributes {dimension_semantics = [#tpu.dimension_semantics<parallel>], iteration_bounds = array<i64: 1>, scalar_prefetch = 0 : i64, scratch_operands = 0 : i64, tpu.core_type = #tpu.core_type<tc>, window_params = [{transform_indices = @transform_0, window_bounds = array<i64: 4, 1444>}, {pipeline_mode = #tpu.pipeline_mode<synchronous>, transform_indices = @transform_1, window_bounds = array<i64: 250, 1444>}, {transform_indices = @transform_2, window_bounds = array<i64: 4, 250>}]} {
    %c0 = arith.constant 0 : index
    %c0_0 = arith.constant 0 : index
    %0 = vector.load %arg1[%c0, %c0_0] : memref<4x1444xf32, #tpu.memory_space<vmem>>, vector<4x1444xf32>
    %c0_1 = arith.constant 0 : index
    %c0_2 = arith.constant 0 : index
    %1 = vector.load %arg2[%c0_1, %c0_2] : memref<250x1444xf32, #tpu.memory_space<vmem>>, vector<250x1444xf32>
    %cst = arith.constant dense<0.000000e+00> : vector<4x250xf32>
    %2 = tpu.matmul %0, %1, %cst {dimension_numbers = #tpu.dot_dimension_numbers<[1], [1], [0], [0], [0, 0, 1, 0], [], []>} : vector<4x1444xf32>, vector<250x1444xf32>, vector<4x250xf32> -> vector<4x250xf32>
    %c0_3 = arith.constant 0 : index
    %c0_4 = arith.constant 0 : index
    %3 = vector.load %arg3[%c0_3, %c0_4] : memref<4x250xf32, #tpu.memory_space<vmem>>, vector<4x250xf32>
    tpu.vector_store %arg3[%c0_3, %c0_4], %2 {strides = array<i32>} : memref<4x250xf32, #tpu.memory_space<vmem>>, vector<4x250xf32>,
    return
  }
  func.func @transform_0(%arg0: i32) -> (i32, i32) {
    %c0_i32 = arith.constant 0 : i32
    %c0_i32_0 = arith.constant 0 : i32
    return %arg0, %c0_i32 : i32, i32
  }
  func.func @transform_1(%arg0: i32) -> (i32, i32) {
    %c0_i32 = arith.constant 0 : i32
    %c0_i32_0 = arith.constant 0 : i32
    %c0_i32_1 = arith.constant 0 : i32
    return %c0_i32, %c0_i32_0 : i32, i32
  }
  func.func @transform_2(%arg0: i32) -> (i32, i32) {
    %c0_i32 = arith.constant 0 : i32
    %c0_i32_0 = arith.constant 0 : i32
    return %arg0, %c0_i32 : i32, i32
  }
}

</mosaic_0001>

<llo_original>
// kernel: tpu_custom_call.1
$region0: #{tpu_custom_call.1}
  #allocation0 [shape = 'u32[]', space=smem, size = 0x4, offset = 0x4, fixed_abs, tag = 'smem constant byte address 0x4 - core index']
  #allocation1 [shape = 'u32[144,128]{1,0:T(1,128)}', space=vmem, size = 0x12000, scoped, tag = 'internal scratch']
  %s0 = inlined_call_operand.vmem [shape: f32[4,1444], index: 0, kind: input, shape index: {}]
  %s1 = inlined_call_operand.vmem [shape: f32[250,1444], index: 1, kind: input, shape index: {}]
  %s2 = inlined_call_operand.hbm [shape: f32[4,250], index: 2, kind: output, shape index: {}]
  %s3 = sld [smem:[#allocation0]]
  $region18: #{tpu_custom_call.1} parent=0
    _
  %s5 = ssub.s32 1, %s3
  %s6 = scalar_select 0, %s5, %s3
  $region1: #{tpu_custom_call.1} parent=0
    #allocation2 [shape = 'u8[4096]{0}', space=vmem, size = 0x1000, scoped, tag = 'output window, operand 0, single buffered']
    #allocation3 [shape = 's32[1]{0}', space=sflag, size = 0x4, scoped, tag = 'scoped memory for tpu_custom_call.1']
    %7 = vsyncpa [#allocation3], 0
    // Predicated region
    $region2: #{tpu_custom_call.1} parent=1 // pred_check
      _
    $region3: #{tpu_custom_call.1} parent=1 // pred_check_branch
      %9 = sbr.rel (0) target = $region5
    $region4: #{tpu_custom_call.1} parent=1 // pred_region
      _
    $region5: #{tpu_custom_call.1} parent=1 // pred_fallthru
      _
    // Predicated region
    $region6: #{tpu_custom_call.1} parent=1 // pred_check
      _
    $region7: #{tpu_custom_call.1} parent=1 // pred_check_branch
      %11 = sbr.rel (0) target = $region9
    $region8: #{tpu_custom_call.1} parent=1 // pred_region
      _
    $region9: #{tpu_custom_call.1} parent=1 // pred_fallthru
      _
    %v12 = vld [vmem:[%s0] sm:$0xff]
    %v13 = vld [vmem:[%s0 + $0x8] sm:$0xff]
    %v14 = vld [vmem:[%s0 + $0x10] sm:$0xff]
    %v15 = vld [vmem:[%s0 + $0x18] sm:$0xff]
    %v16 = vld [vmem:[%s0 + $0x20] sm:$0xff]
    %v17 = vld [vmem:[%s0 + $0x28] sm:$0xff]
    %v18 = vld [vmem:[%s1] sm:$0xff]
    %v19 = vld [vmem:[%s1 + $0x8] sm:$0xff]
    %v20 = vld [vmem:[%s1 + $0x10] sm:$0xff]
    %v21 = vld [vmem:[%s1 + $0x18] sm:$0xff]
    %v22 = vld [vmem:[%s1 + $0x20] sm:$0xff]
    %v23 = vld [vmem:[%s1 + $0x28] sm:$0xff]
    %v24 = vld [vmem:[%s1 + $0x30] sm:$0xff]
    %v25 = vld [vmem:[%s1 + $0x38] sm:$0xff]
    %v26 = vld [vmem:[%s1 + $0x40] sm:$0xff]
    %v27 = vld [vmem:[%s1 + $0x48] sm:$0xff]
    %v28 = vld [vmem:[%s1 + $0x50] sm:$0xff]
    %v29 = vld [vmem:[%s1 + $0x58] sm:$0xff]
    %v30 = vld [vmem:[%s1 + $0x60] sm:$0xff]
    %v31 = vld [vmem:[%s1 + $0x68] sm:$0xff]
    %v32 = vld [vmem:[%s1 + $0x70] sm:$0xff]
    %v33 = vld [vmem:[%s1 + $0x78] sm:$0xff]
    %v34 = vld [vmem:[%s1 + $0x80] sm:$0xff]
    %v35 = vld [vmem:[%s1 + $0x88] sm:$0xff]
    %v36 = vld [vmem:[%s1 + $0x90] sm:$0xff]
    %v37 = vld [vmem:[%s1 + $0x98] sm:$0xff]
    %v38 = vld [vmem:[%s1 + $0xa0] sm:$0xff]
    %v39 = vld [vmem:[%s1 + $0xa8] sm:$0xff]
    %v40 = vld [vmem:[%s1 + $0xb0] sm:$0xff]
    %v41 = vld [vmem:[%s1 + $0xb8] sm:$0xff]
    %v42 = vld [vmem:[%s1 + $0xc0] sm:$0xff]
    %v43 = vld [vmem:[%s1 + $0xc8] sm:$0xff]
    %v44 = vld [vmem:[%s1 + $0xd0] sm:$0xff]
    %v45 = vld [vmem:[%s1 + $0xd8] sm:$0xff]
    %v46 = vld [vmem:[%s1 + $0xe0] sm:$0xff]
    %v47 = vld [vmem:[%s1 + $0xe8] sm:$0xff]
    %v48 = vld [vmem:[%s1 + $0xf0] sm:$0xff]
    %v49 = vld [vmem:[%s1 + $0xf8] sm:$0xff]
    %v50 = vld [vmem:[%s1 + $0x100] sm:$0xff]
    %v51 = vld [vmem:[%s1 + $0x108] sm:$0xff]
    %v52 = vld [vmem:[%s1 + $0x110] sm:$0xff]
    %v53 = vld [vmem:[%s1 + $0x118] sm:$0xff]
    %v54 = vld [vmem:[%s1 + $0x120] sm:$0xff]
    %v55 = vld [vmem:[%s1 + $0x128] sm:$0xff]
    %v56 = vld [vmem:[%s1 + $0x130] sm:$0xff]
    %v57 = vld [vmem:[%s1 + $0x138] sm:$0xff]
    %v58 = vld [vmem:[%s1 + $0x140] sm:$0xff]
    %v59 = vld [vmem:[%s1 + $0x148] sm:$0xff]
    %v60 = vld [vmem:[%s1 + $0x150] sm:$0xff]
    %v61 = vld [vmem:[%s1 + $0x158] sm:$0xff]
    %v62 = vld [vmem:[%s1 + $0x160] sm:$0xff]
    %v63 = vld [vmem:[%s1 + $0x168] sm:$0xff]
    %v64 = vld [vmem:[%s1 + $0x170] sm:$0xff]
    %v65 = vld [vmem:[%s1 + $0x178] sm:$0xff]
    %v66 = vld [vmem:[%s1 + $0x180] sm:$0xff]
    %v67 = vld [vmem:[%s1 + $0x188] sm:$0xff]
    %v68 = vld [vmem:[%s1 + $0x190] sm:$0xff]
    %v69 = vld [vmem:[%s1 + $0x198] sm:$0xff]
    %v70 = vld [vmem:[%s1 + $0x1a0] sm:$0xff]
    %v71 = vld [vmem:[%s1 + $0x1a8] sm:$0xff]
    %v72 = vld [vmem:[%s1 + $0x1b0] sm:$0xff]
    %v73 = vld [vmem:[%s1 + $0x1b8] sm:$0xff]
    %v74 = vld [vmem:[%s1 + $0x1c0] sm:$0xff]
    %v75 = vld [vmem:[%s1 + $0x1c8] sm:$0xff]
    %v76 = vld [vmem:[%s1 + $0x1d0] sm:$0xff]
    %v77 = vld [vmem:[%s1 + $0x1d8] sm:$0xff]
    %v78 = vld [vmem:[%s1 + $0x1e0] sm:$0xff]
    %v79 = vld [vmem:[%s1 + $0x1e8] sm:$0xff]
    %v80 = vld [vmem:[%s1 + $0x1f0] sm:$0xff]
    %v81 = vld [vmem:[%s1 + $0x1f8] sm:$0xff]
    %v82 = vld [vmem:[%s1 + $0x200] sm:$0xff]
    %v83 = vld [vmem:[%s1 + $0x208] sm:$0xff]
    %v84 = vld [vmem:[%s1 + $0x210] sm:$0xff]
    %v85 = vld [vmem:[%s1 + $0x218] sm:$0xff]
    %v86 = vld [vmem:[%s1 + $0x220] sm:$0xff]
    %v87 = vld [vmem:[%s1 + $0x228] sm:$0xff]
    %v88 = vld [vmem:[%s1 + $0x230] sm:$0xff]
    %v89 = vld [vmem:[%s1 + $0x238] sm:$0xff]
    %v90 = vld [vmem:[%s1 + $0x240] sm:$0xff]
    %v91 = vld [vmem:[%s1 + $0x248] sm:$0xff]
    %v92 = vld [vmem:[%s1 + $0x250] sm:$0xff]
    %v93 = vld [vmem:[%s1 + $0x258] sm:$0xff]
    %v94 = vld [vmem:[%s1 + $0x260] sm:$0xff]
    %v95 = vld [vmem:[%s1 + $0x268] sm:$0xff]
    %v96 = vld [vmem:[%s1 + $0x270] sm:$0xff]
    %v97 = vld [vmem:[%s1 + $0x278] sm:$0xff]
    %v98 = vld [vmem:[%s1 + $0x280] sm:$0xff]
    %v99 = vld [vmem:[%s1 + $0x288] sm:$0xff]
    %v100 = vld [vmem:[%s1 + $0x290] sm:$0xff]
    %v101 = vld [vmem:[%s1 + $0x298] sm:$0xff]
    %v102 = vld [vmem:[%s1 + $0x2a0] sm:$0xff]
    %v103 = vld [vmem:[%s1 + $0x2a8] sm:$0xff]
    %v104 = vld [vmem:[%s1 + $0x2b0] sm:$0xff]
    %v105 = vld [vmem:[%s1 + $0x2b8] sm:$0xff]
    %v106 = vld [vmem:[%s1 + $0x2c0] sm:$0xff]
    %v107 = vld [vmem:[%s1 + $0x2c8] sm:$0xff]
    %v108 = vld [vmem:[%s1 + $0x2d0] sm:$0xff]
    %v109 = vld [vmem:[%s1 + $0x2d8] sm:$0xff]
    %v110 = vld [vmem:[%s1 + $0x2e0] sm:$0xff]
    %v111 = vld [vmem:[%s1 + $0x2e8] sm:$0xff]
    %v112 = vld [vmem:[%s1 + $0x2f0] sm:$0xff]
    %v113 = vld [vmem:[%s1 + $0x2f8] sm:$0xff]
    %v114 = vld [vmem:[%s1 + $0x300] sm:$0xff]
    %v115 = vld [vmem:[%s1 + $0x308] sm:$0xff]
    %v116 = vld [vmem:[%s1 + $0x310] sm:$0xff]
    %v117 = vld [vmem:[%s1 + $0x318] sm:$0xff]
    %v118 = vld [vmem:[%s1 + $0x320] sm:$0xff]
    %v119 = vld [vmem:[%s1 + $0x328] sm:$0xff]
    %v120 = vld [vmem:[%s1 + $0x330] sm:$0xff]
    %v121 = vld [vmem:[%s1 + $0x338] sm:$0xff]
    %v122 = vld [vmem:[%s1 + $0x340] sm:$0xff]
    %v123 = vld [vmem:[%s1 + $0x348] sm:$0xff]
    %v124 = vld [vmem:[%s1 + $0x350] sm:$0xff]
    %v125 = vld [vmem:[%s1 + $0x358] sm:$0xff]
    %v126 = vld [vmem:[%s1 + $0x360] sm:$0xff]
    %v127 = vld [vmem:[%s1 + $0x368] sm:$0xff]
    %v128 = vld [vmem:[%s1 + $0x370] sm:$0xff]
    %v129 = vld [vmem:[%s1 + $0x378] sm:$0xff]
    %v130 = vld [vmem:[%s1 + $0x380] sm:$0xff]
    %v131 = vld [vmem:[%s1 + $0x388] sm:$0xff]
    %v132 = vld [vmem:[%s1 + $0x390] sm:$0xff]
    %v133 = vld [vmem:[%s1 + $0x398] sm:$0xff]
    %v134 = vld [vmem:[%s1 + $0x3a0] sm:$0xff]
    %v135 = vld [vmem:[%s1 + $0x3a8] sm:$0xff]
    %v136 = vld [vmem:[%s1 + $0x3b0] sm:$0xff]
    %v137 = vld [vmem:[%s1 + $0x3b8] sm:$0xff]
    %v138 = vld [vmem:[%s1 + $0x3c0] sm:$0xff]
    %v139 = vld [vmem:[%s1 + $0x3c8] sm:$0xff]
    %v140 = vld [vmem:[%s1 + $0x3d0] sm:$0xff]
    %v141 = vld [vmem:[%s1 + $0x3d8] sm:$0xff]
    %v142 = vld [vmem:[%s1 + $0x3e0] sm:$0xff]
    %v143 = vld [vmem:[%s1 + $0x3e8] sm:$0xff]
    %v144 = vld [vmem:[%s1 + $0x3f0] sm:$0xff]
    %v145 = vld [vmem:[%s1 + $0x3f8] sm:$0xff]
    %v146 = vld [vmem:[%s1 + $0x400] sm:$0xff]
    %v147 = vld [vmem:[%s1 + $0x408] sm:$0xff]
    %v148 = vld [vmem:[%s1 + $0x410] sm:$0xff]
    %v149 = vld [vmem:[%s1 + $0x418] sm:$0xff]
    %v150 = vld [vmem:[%s1 + $0x420] sm:$0xff]
    %v151 = vld [vmem:[%s1 + $0x428] sm:$0xff]
    %v152 = vld [vmem:[%s1 + $0x430] sm:$0xff]
    %v153 = vld [vmem:[%s1 + $0x438] sm:$0xff]
    %v154 = vld [vmem:[%s1 + $0x440] sm:$0xff]
    %v155 = vld [vmem:[%s1 + $0x448] sm:$0xff]
    %v156 = vld [vmem:[%s1 + $0x450] sm:$0xff]
    %v157 = vld [vmem:[%s1 + $0x458] sm:$0xff]
    %v158 = vld [vmem:[%s1 + $0x460] sm:$0xff]
    %v159 = vld [vmem:[%s1 + $0x468] sm:$0xff]
    %v160 = vld [vmem:[%s1 + $0x470] sm:$0xff]
    %v161 = vld [vmem:[%s1 + $0x478] sm:$0xff]
    %v162 = vld [vmem:[%s1 + $0x480] sm:$0xff]
    %v163 = vld [vmem:[%s1 + $0x488] sm:$0xff]
    %v164 = vld [vmem:[%s1 + $0x490] sm:$0xff]
    %v165 = vld [vmem:[%s1 + $0x498] sm:$0xff]
    %v166 = vld [vmem:[%s1 + $0x4a0] sm:$0xff]
    %v167 = vld [vmem:[%s1 + $0x4a8] sm:$0xff]
    %v168 = vld [vmem:[%s1 + $0x4b0] sm:$0xff]
    %v169 = vld [vmem:[%s1 + $0x4b8] sm:$0xff]
    %v170 = vld [vmem:[%s1 + $0x4c0] sm:$0xff]
    %v171 = vld [vmem:[%s1 + $0x4c8] sm:$0xff]
    %v172 = vld [vmem:[%s1 + $0x4d0] sm:$0xff]
    %v173 = vld [vmem:[%s1 + $0x4d8] sm:$0xff]
    %v174 = vld [vmem:[%s1 + $0x4e0] sm:$0xff]
    %v175 = vld [vmem:[%s1 + $0x4e8] sm:$0xff]
    %v176 = vld [vmem:[%s1 + $0x4f0] sm:$0xff]
    %v177 = vld [vmem:[%s1 + $0x4f8] sm:$0xff]
    %v178 = vld [vmem:[%s1 + $0x500] sm:$0xff]
    %v179 = vld [vmem:[%s1 + $0x508] sm:$0xff]
    %v180 = vld [vmem:[%s1 + $0x510] sm:$0xff]
    %v181 = vld [vmem:[%s1 + $0x518] sm:$0xff]
    %v182 = vld [vmem:[%s1 + $0x520] sm:$0xff]
    %v183 = vld [vmem:[%s1 + $0x528] sm:$0xff]
    %v184 = vld [vmem:[%s1 + $0x530] sm:$0xff]
    %v185 = vld [vmem:[%s1 + $0x538] sm:$0xff]
    %v186 = vld [vmem:[%s1 + $0x540] sm:$0xff]
    %v187 = vld [vmem:[%s1 + $0x548] sm:$0xff]
    %v188 = vld [vmem:[%s1 + $0x550] sm:$0xff]
    %v189 = vld [vmem:[%s1 + $0x558] sm:$0xff]
    %v190 = vld [vmem:[%s1 + $0x560] sm:$0xff]
    %v191 = vld [vmem:[%s1 + $0x568] sm:$0xff]
    %v192 = vld [vmem:[%s1 + $0x570] sm:$0xff]
    %v193 = vld [vmem:[%s1 + $0x578] sm:$0xff]
    %v194 = vld [vmem:[%s1 + $0x580] sm:$0xff]
    %v195 = vld [vmem:[%s1 + $0x588] sm:$0xff]
    %v196 = vld [vmem:[%s1 + $0x590] sm:$0xff]
    %v197 = vld [vmem:[%s1 + $0x598] sm:$0xff]
    %v198 = vld [vmem:[%s1 + $0x5a0] sm:$0xff]
    %v199 = vld [vmem:[%s1 + $0x5a8] sm:$0xff]
    %v200 = vld [vmem:[%s1 + $0x5b0] sm:$0xff]
    %v201 = vld [vmem:[%s1 + $0x5b8] sm:$0xff]
    %v202 = vld [vmem:[%s1 + $0x5c0] sm:$0xff]
    %v203 = vld [vmem:[%s1 + $0x5c8] sm:$0xff]
    %v204 = vld [vmem:[%s1 + $0x5d0] sm:$0xff]
    %v205 = vld [vmem:[%s1 + $0x5d8] sm:$0xff]
    %v206 = vld [vmem:[%s1 + $0x5e0] sm:$0xff]
    %v207 = vld [vmem:[%s1 + $0x5e8] sm:$0xff]
    %v208 = vld [vmem:[%s1 + $0x5f0] sm:$0xff]
    %v209 = vld [vmem:[%s1 + $0x5f8] sm:$0xff]
    %v210 = vld [vmem:[%s1 + $0x600] sm:$0xff]
    %v211 = vld [vmem:[%s1 + $0x608] sm:$0xff]
    %v212 = vld [vmem:[%s1 + $0x610] sm:$0xff]
    %v213 = vld [vmem:[%s1 + $0x618] sm:$0xff]
    %v214 = vld [vmem:[%s1 + $0x620] sm:$0xff]
    %v215 = vld [vmem:[%s1 + $0x628] sm:$0xff]
    %v216 = vld [vmem:[%s1 + $0x630] sm:$0xff]
    %v217 = vld [vmem:[%s1 + $0x638] sm:$0xff]
    %v218 = vld [vmem:[%s1 + $0x640] sm:$0xff]
    %v219 = vld [vmem:[%s1 + $0x648] sm:$0xff]
    %v220 = vld [vmem:[%s1 + $0x650] sm:$0xff]
    %v221 = vld [vmem:[%s1 + $0x658] sm:$0xff]
    %v222 = vld [vmem:[%s1 + $0x660] sm:$0xff]
    %v223 = vld [vmem:[%s1 + $0x668] sm:$0xff]
    %v224 = vld [vmem:[%s1 + $0x670] sm:$0xff]
    %v225 = vld [vmem:[%s1 + $0x678] sm:$0xff]
    %v226 = vld [vmem:[%s1 + $0x680] sm:$0xff]
    %v227 = vld [vmem:[%s1 + $0x688] sm:$0xff]
    %v228 = vld [vmem:[%s1 + $0x690] sm:$0xff]
    %v229 = vld [vmem:[%s1 + $0x698] sm:$0xff]
    %v230 = vld [vmem:[%s1 + $0x6a0] sm:$0xff]
    %v231 = vld [vmem:[%s1 + $0x6a8] sm:$0xff]
    %v232 = vld [vmem:[%s1 + $0x6b0] sm:$0xff]
    %v233 = vld [vmem:[%s1 + $0x6b8] sm:$0xff]
    %v234 = vld [vmem:[%s1 + $0x6c0] sm:$0xff]
    %v235 = vld [vmem:[%s1 + $0x6c8] sm:$0xff]
    %v236 = vld [vmem:[%s1 + $0x6d0] sm:$0xff]
    %v237 = vld [vmem:[%s1 + $0x6d8] sm:$0xff]
    %v238 = vld [vmem:[%s1 + $0x6e0] sm:$0xff]
    %v239 = vld [vmem:[%s1 + $0x6e8] sm:$0xff]
    %v240 = vld [vmem:[%s1 + $0x6f0] sm:$0xff]
    %v241 = vld [vmem:[%s1 + $0x6f8] sm:$0xff]
    %v242 = vld [vmem:[%s1 + $0x700] sm:$0xff]
    %v243 = vld [vmem:[%s1 + $0x708] sm:$0xff]
    %v244 = vld [vmem:[%s1 + $0x710] sm:$0xff]
    %v245 = vld [vmem:[%s1 + $0x718] sm:$0xff]
    %v246 = vld [vmem:[%s1 + $0x720] sm:$0xff]
    %v247 = vld [vmem:[%s1 + $0x728] sm:$0xff]
    %v248 = vld [vmem:[%s1 + $0x730] sm:$0xff]
    %v249 = vld [vmem:[%s1 + $0x738] sm:$0xff]
    %v250 = vld [vmem:[%s1 + $0x740] sm:$0xff]
    %v251 = vld [vmem:[%s1 + $0x748] sm:$0xff]
    %v252 = vld [vmem:[%s1 + $0x750] sm:$0xff]
    %v253 = vld [vmem:[%s1 + $0x758] sm:$0xff]
    %v254 = vld [vmem:[%s1 + $0x760] sm:$0xff]
    %v255 = vld [vmem:[%s1 + $0x768] sm:$0xff]
    %v256 = vld [vmem:[%s1 + $0x770] sm:$0xff]
    %v257 = vld [vmem:[%s1 + $0x778] sm:$0xff]
    %v258 = vld [vmem:[%s1 + $0x780] sm:$0xff]
    %v259 = vld [vmem:[%s1 + $0x788] sm:$0xff]
    %v260 = vld [vmem:[%s1 + $0x790] sm:$0xff]
    %v261 = vld [vmem:[%s1 + $0x798] sm:$0xff]
    %v262 = vld [vmem:[%s1 + $0x7a0] sm:$0xff]
    %v263 = vld [vmem:[%s1 + $0x7a8] sm:$0xff]
    %v264 = vld [vmem:[%s1 + $0x7b0] sm:$0xff]
    %v265 = vld [vmem:[%s1 + $0x7b8] sm:$0xff]
    %v266 = vld [vmem:[%s1 + $0x7c0] sm:$0xff]
    %v267 = vld [vmem:[%s1 + $0x7c8] sm:$0xff]
    %v268 = vld [vmem:[%s1 + $0x7d0] sm:$0xff]
    %v269 = vld [vmem:[%s1 + $0x7d8] sm:$0xff]
    %v270 = vld [vmem:[%s1 + $0x7e0] sm:$0xff]
    %v271 = vld [vmem:[%s1 + $0x7e8] sm:$0xff]
    %v272 = vld [vmem:[%s1 + $0x7f0] sm:$0xff]
    %v273 = vld [vmem:[%s1 + $0x7f8] sm:$0xff]
    %v274 = vld [vmem:[%s1 + $0x800] sm:$0xff]
    %v275 = vld [vmem:[%s1 + $0x808] sm:$0xff]
    %v276 = vld [vmem:[%s1 + $0x810] sm:$0xff]
    %v277 = vld [vmem:[%s1 + $0x818] sm:$0xff]
    %v278 = vld [vmem:[%s1 + $0x820] sm:$0xff]
    %v279 = vld [vmem:[%s1 + $0x828] sm:$0xff]
    %v280 = vld [vmem:[%s1 + $0x830] sm:$0xff]
    %v281 = vld [vmem:[%s1 + $0x838] sm:$0xff]
    %v282 = vld [vmem:[%s1 + $0x840] sm:$0xff]
    %v283 = vld [vmem:[%s1 + $0x848] sm:$0xff]
    %v284 = vld [vmem:[%s1 + $0x850] sm:$0xff]
    %v285 = vld [vmem:[%s1 + $0x858] sm:$0xff]
    %v286 = vld [vmem:[%s1 + $0x860] sm:$0xff]
    %v287 = vld [vmem:[%s1 + $0x868] sm:$0xff]
    %v288 = vld [vmem:[%s1 + $0x870] sm:$0xff]
    %v289 = vld [vmem:[%s1 + $0x878] sm:$0xff]
    %v290 = vld [vmem:[%s1 + $0x880] sm:$0xff]
    %v291 = vld [vmem:[%s1 + $0x888] sm:$0xff]
    %v292 = vld [vmem:[%s1 + $0x890] sm:$0xff]
    %v293 = vld [vmem:[%s1 + $0x898] sm:$0xff]
    %v294 = vld [vmem:[%s1 + $0x8a0] sm:$0xff]
    %v295 = vld [vmem:[%s1 + $0x8a8] sm:$0xff]
    %v296 = vld [vmem:[%s1 + $0x8b0] sm:$0xff]
    %v297 = vld [vmem:[%s1 + $0x8b8] sm:$0xff]
    %v298 = vld [vmem:[%s1 + $0x8c0] sm:$0xff]
    %v299 = vld [vmem:[%s1 + $0x8c8] sm:$0xff]
    %v300 = vld [vmem:[%s1 + $0x8d0] sm:$0xff]
    %v301 = vld [vmem:[%s1 + $0x8d8] sm:$0xff]
    %v302 = vld [vmem:[%s1 + $0x8e0] sm:$0xff]
    %v303 = vld [vmem:[%s1 + $0x8e8] sm:$0xff]
    %v304 = vld [vmem:[%s1 + $0x8f0] sm:$0xff]
    %v305 = vld [vmem:[%s1 + $0x8f8] sm:$0xff]
    %v306 = vld [vmem:[%s1 + $0x900] sm:$0xff]
    %v307 = vld [vmem:[%s1 + $0x908] sm:$0xff]
    %v308 = vld [vmem:[%s1 + $0x910] sm:$0xff]
    %v309 = vld [vmem:[%s1 + $0x918] sm:$0xff]
    %v310 = vld [vmem:[%s1 + $0x920] sm:$0xff]
    %v311 = vld [vmem:[%s1 + $0x928] sm:$0xff]
    %v312 = vld [vmem:[%s1 + $0x930] sm:$0xff]
    %v313 = vld [vmem:[%s1 + $0x938] sm:$0xff]
    %v314 = vld [vmem:[%s1 + $0x940] sm:$0xff]
    %v315 = vld [vmem:[%s1 + $0x948] sm:$0xff]
    %v316 = vld [vmem:[%s1 + $0x950] sm:$0xff]
    %v317 = vld [vmem:[%s1 + $0x958] sm:$0xff]
    %v318 = vld [vmem:[%s1 + $0x960] sm:$0xff]
    %v319 = vld [vmem:[%s1 + $0x968] sm:$0xff]
    %v320 = vld [vmem:[%s1 + $0x970] sm:$0xff]
    %v321 = vld [vmem:[%s1 + $0x978] sm:$0xff]
    %v322 = vld [vmem:[%s1 + $0x980] sm:$0xff]
    %v323 = vld [vmem:[%s1 + $0x988] sm:$0xff]
    %v324 = vld [vmem:[%s1 + $0x990] sm:$0xff]
    %v325 = vld [vmem:[%s1 + $0x998] sm:$0xff]
    %v326 = vld [vmem:[%s1 + $0x9a0] sm:$0xff]
    %v327 = vld [vmem:[%s1 + $0x9a8] sm:$0xff]
    %v328 = vld [vmem:[%s1 + $0x9b0] sm:$0xff]
    %v329 = vld [vmem:[%s1 + $0x9b8] sm:$0xff]
    %v330 = vld [vmem:[%s1 + $0x9c0] sm:$0xff]
    %v331 = vld [vmem:[%s1 + $0x9c8] sm:$0xff]
    %v332 = vld [vmem:[%s1 + $0x9d0] sm:$0xff]
    %v333 = vld [vmem:[%s1 + $0x9d8] sm:$0xff]
    %v334 = vld [vmem:[%s1 + $0x9e0] sm:$0xff]
    %v335 = vld [vmem:[%s1 + $0x9e8] sm:$0xff]
    %v336 = vld [vmem:[%s1 + $0x9f0] sm:$0xff]
    %v337 = vld [vmem:[%s1 + $0x9f8] sm:$0xff]
    %v338 = vld [vmem:[%s1 + $0xa00] sm:$0xff]
    %v339 = vld [vmem:[%s1 + $0xa08] sm:$0xff]
    %v340 = vld [vmem:[%s1 + $0xa10] sm:$0xff]
    %v341 = vld [vmem:[%s1 + $0xa18] sm:$0xff]
    %v342 = vld [vmem:[%s1 + $0xa20] sm:$0xff]
    %v343 = vld [vmem:[%s1 + $0xa28] sm:$0xff]
    %v344 = vld [vmem:[%s1 + $0xa30] sm:$0xff]
    %v345 = vld [vmem:[%s1 + $0xa38] sm:$0xff]
    %v346 = vld [vmem:[%s1 + $0xa40] sm:$0xff]
    %v347 = vld [vmem:[%s1 + $0xa48] sm:$0xff]
    %v348 = vld [vmem:[%s1 + $0xa50] sm:$0xff]
    %v349 = vld [vmem:[%s1 + $0xa58] sm:$0xff]
    %v350 = vld [vmem:[%s1 + $0xa60] sm:$0xff]
    %v351 = vld [vmem:[%s1 + $0xa68] sm:$0xff]
    %v352 = vld [vmem:[%s1 + $0xa70] sm:$0xff]
    %v353 = vld [vmem:[%s1 + $0xa78] sm:$0xff]
    %v354 = vld [vmem:[%s1 + $0xa80] sm:$0xff]
    %v355 = vld [vmem:[%s1 + $0xa88] sm:$0xff]
    %v356 = vld [vmem:[%s1 + $0xa90] sm:$0xff]
    %v357 = vld [vmem:[%s1 + $0xa98] sm:$0xff]
    %v358 = vld [vmem:[%s1 + $0xaa0] sm:$0xff]
    %v359 = vld [vmem:[%s1 + $0xaa8] sm:$0xff]
    %v360 = vld [vmem:[%s1 + $0xab0] sm:$0xff]
    %v361 = vld [vmem:[%s1 + $0xab8] sm:$0xff]
    %v362 = vld [vmem:[%s1 + $0xac0] sm:$0xff]
    %v363 = vld [vmem:[%s1 + $0xac8] sm:$0xff]
    %v364 = vld [vmem:[%s1 + $0xad0] sm:$0xff]
    %v365 = vld [vmem:[%s1 + $0xad8] sm:$0xff]
    %v366 = vld [vmem:[%s1 + $0xae0] sm:$0xff]
    %v367 = vld [vmem:[%s1 + $0xae8] sm:$0xff]
    %v368 = vld [vmem:[%s1 + $0xaf0] sm:$0xff]
    %v369 = vld [vmem:[%s1 + $0xaf8] sm:$0xff]
    %v370 = vld [vmem:[%s1 + $0xb00] sm:$0xff]
    %v371 = vld [vmem:[%s1 + $0xb08] sm:$0xff]
    %v372 = vld [vmem:[%s1 + $0xb10] sm:$0xff]
    %v373 = vld [vmem:[%s1 + $0xb18] sm:$0xff]
    %v374 = vld [vmem:[%s1 + $0xb20] sm:$0xff]
    %v375 = vld [vmem:[%s1 + $0xb28] sm:$0xff]
    %v376 = vld [vmem:[%s1 + $0xb30] sm:$0xff]
    %v377 = vld [vmem:[%s1 + $0xb38] sm:$0xff]
    %v378 = vld [vmem:[%s1 + $0xb40] sm:$0xff]
    %v379 = vld [vmem:[%s1 + $0xb48] sm:$0xff]
    %v380 = vld [vmem:[%s1 + $0xb50] sm:$0xff]
    %v381 = vld [vmem:[%s1 + $0xb58] sm:$0xff]
    %v382 = vld [vmem:[%s1 + $0xb60] sm:$0xff]
    %v383 = vld [vmem:[%s1 + $0xb68] sm:$0xff]
    %v384 = vld [vmem:[%s1 + $0xb70] sm:$0xff]
    %v385 = vld [vmem:[%s1 + $0xb78] sm:$0xff]
    %v386 = vld [vmem:[%s1 + $0xb80] sm:$0xff]
    %v387 = vld [vmem:[%s1 + $0xb88] sm:$0xff]
    %v388 = vld [vmem:[%s1 + $0xb90] sm:$0xff]
    %v389 = vld [vmem:[%s1 + $0xb98] sm:$0xff]
    %v390 = vld [vmem:[%s1 + $0xba0] sm:$0x3]
    %v391 = vld [vmem:[%s1 + $0xba8] sm:$0x3]
    %v392 = vld [vmem:[%s1 + $0xbb0] sm:$0x3]
    %v393 = vld [vmem:[%s1 + $0xbb8] sm:$0x3]
    %v394 = vld [vmem:[%s1 + $0xbc0] sm:$0x3]
    %v395 = vld [vmem:[%s1 + $0xbc8] sm:$0x3]
    %v396 = vld [vmem:[%s1 + $0xbd0] sm:$0x3]
    %v397 = vld [vmem:[%s1 + $0xbd8] sm:$0x3]
    %v398 = vld [vmem:[%s1 + $0xbe0] sm:$0x3]
    %v399 = vld [vmem:[%s1 + $0xbe8] sm:$0x3]
    %v400 = vld [vmem:[%s1 + $0xbf0] sm:$0x3]
    %v401 = vld [vmem:[%s1 + $0xbf8] sm:$0x3]
    %v408 = vcombine.high %v12, %v12
    %v409 = vcombine.high %v13, %v13
    %v410 = vcombine.high %v14, %v14
    %v411 = vcombine.high %v15, %v15
    %v412 = vcombine.high %v16, %v16
    %v413 = vcombine.high %v17, %v17
    %vm419 = vcmask 293888
    %v420 = vsel %vm419, %v413, 0
    %v423 = vsel %vm419, %v29, 0
    %v426 = vsel %vm419, %v41, 0
    %v429 = vsel %vm419, %v53, 0
    %v432 = vsel %vm419, %v65, 0
    %v435 = vsel %vm419, %v77, 0
    %v438 = vsel %vm419, %v89, 0
    %v441 = vsel %vm419, %v101, 0
    %v444 = vsel %vm419, %v113, 0
    %v447 = vsel %vm419, %v125, 0
    %v450 = vsel %vm419, %v137, 0
    %v453 = vsel %vm419, %v149, 0
    %v456 = vsel %vm419, %v161, 0
    %v459 = vsel %vm419, %v173, 0
    %v462 = vsel %vm419, %v185, 0
    %v465 = vsel %vm419, %v197, 0
    %v468 = vsel %vm419, %v209, 0
    %v471 = vsel %vm419, %v221, 0
    %v474 = vsel %vm419, %v233, 0
    %v477 = vsel %vm419, %v245, 0
    %v480 = vsel %vm419, %v257, 0
    %v483 = vsel %vm419, %v269, 0
    %v486 = vsel %vm419, %v281, 0
    %v489 = vsel %vm419, %v293, 0
    %v492 = vsel %vm419, %v305, 0
    %v495 = vsel %vm419, %v317, 0
    %v498 = vsel %vm419, %v329, 0
    %v501 = vsel %vm419, %v341, 0
    %v504 = vsel %vm419, %v353, 0
    %v507 = vsel %vm419, %v365, 0
    %v510 = vsel %vm419, %v377, 0
    %v513 = vsel %vm419, %v389, 0
    %v516 = vsel %vm419, %v401, 0
    %518 = vmatprep.subr.mxu0 %v19
    %519 = vmatpush1.xpose.msra.mxu0 %v18
    %520 = vmatprep.subr.mxu0 %v31
    %521 = vmatpush1.xpose.msra.mxu0 %v30
    %522 = vmatprep.subr.mxu0 %v43
    %523 = vmatpush1.xpose.msra.mxu0 %v42
    %524 = vmatprep.subr.mxu0 %v55
    %525 = vmatpush1.xpose.msra.mxu0 %v54
    %526 = vmatprep.subr.mxu0 %v67
    %527 = vmatpush1.xpose.msra.mxu0 %v66
    %528 = vmatprep.subr.mxu0 %v79
    %529 = vmatpush1.xpose.msra.mxu0 %v78
    %530 = vmatprep.subr.mxu0 %v91
    %531 = vmatpush1.xpose.msra.mxu0 %v90
    %532 = vmatprep.subr.mxu0 %v103
    %533 = vmatpush1.xpose.msra.mxu0 %v102
    %534 = vmatprep.subr.mxu0 %v115
    %535 = vmatpush1.xpose.msra.mxu0 %v114
    %536 = vmatprep.subr.mxu0 %v127
    %537 = vmatpush1.xpose.msra.mxu0 %v126
    %538 = vmatprep.subr.mxu0 %v139
    %539 = vmatpush1.xpose.msra.mxu0 %v138
    %540 = vmatprep.subr.mxu0 %v151
    %541 = vmatpush1.xpose.msra.mxu0 %v150
    %542 = vmatprep.subr.mxu0 %v163
    %543 = vmatpush1.xpose.msra.mxu0 %v162
    %544 = vmatprep.subr.mxu0 %v175
    %545 = vmatpush1.xpose.msra.mxu0 %v174
    %546 = vmatprep.subr.mxu0 %v187
    %547 = vmatpush1.xpose.msra.mxu0 %v186
    %548 = vmatprep.subr.mxu0 %v199
    %549 = vmatpush1.xpose.msra.mxu0 %v198
    %550 = vmatprep.subr.mxu0 %v211
    %551 = vmatpush1.xpose.msra.mxu0 %v210
    %552 = vmatprep.subr.mxu0 %v223
    %553 = vmatpush1.xpose.msra.mxu0 %v222
    %554 = vmatprep.subr.mxu0 %v235
    %555 = vmatpush1.xpose.msra.mxu0 %v234
    %556 = vmatprep.subr.mxu0 %v247
    %557 = vmatpush1.xpose.msra.mxu0 %v246
    %558 = vmatprep.subr.mxu0 %v259
    %559 = vmatpush1.xpose.msra.mxu0 %v258
    %560 = vmatprep.subr.mxu0 %v271
    %561 = vmatpush1.xpose.msra.mxu0 %v270
    %562 = vmatprep.subr.mxu0 %v283
    %563 = vmatpush1.xpose.msra.mxu0 %v282
    %564 = vmatprep.subr.mxu0 %v295
    %565 = vmatpush1.xpose.msra.mxu0 %v294
    %566 = vmatprep.subr.mxu0 %v307
    %567 = vmatpush1.xpose.msra.mxu0 %v306
    %568 = vmatprep.subr.mxu0 %v319
    %569 = vmatpush1.xpose.msra.mxu0 %v318
    %570 = vmatprep.subr.mxu0 %v331
    %571 = vmatpush1.xpose.msra.mxu0 %v330
    %572 = vmatprep.subr.mxu0 %v343
    %573 = vmatpush1.xpose.msra.mxu0 %v342
    %574 = vmatprep.subr.mxu0 %v355
    %575 = vmatpush1.xpose.msra.mxu0 %v354
    %576 = vmatprep.subr.mxu0 %v367
    %577 = vmatpush1.xpose.msra.mxu0 %v366
    %578 = vmatprep.subr.mxu0 %v379
    %579 = vmatpush1.xpose.msra.mxu0 %v378
    %580 = vmatprep.subr.mxu0 %v391
    %581 = vmatpush1.xpose.msra.mxu0 %v390
    %582 = vmatprep.mubr.f32.mxu0 %v408
    %583 = vmatmul.mubr.f32.gmra.mrb[0].mxu0 %v12
    %v584 = vpop.f32.mrb[0].mxu0
    %v585 = vadd.f32 0.0, %v584
    %v586 = vpop.f32.mrb[0].mxu0
    %v587 = vadd.f32 0.0, %v586
    %588 = vdwg.mxu0
    %589 = vmatprep.subr.mxu0 %v21
    %590 = vmatpush1.xpose.msra.mxu0 %v20
    %591 = vmatprep.subr.mxu0 %v33
    %592 = vmatpush1.xpose.msra.mxu0 %v32
    %593 = vmatprep.subr.mxu0 %v45
    %594 = vmatpush1.xpose.msra.mxu0 %v44
    %595 = vmatprep.subr.mxu0 %v57
    %596 = vmatpush1.xpose.msra.mxu0 %v56
    %597 = vmatprep.subr.mxu0 %v69
    %598 = vmatpush1.xpose.msra.mxu0 %v68
    %599 = vmatprep.subr.mxu0 %v81
    %600 = vmatpush1.xpose.msra.mxu0 %v80
    %601 = vmatprep.subr.mxu0 %v93
    %602 = vmatpush1.xpose.msra.mxu0 %v92
    %603 = vmatprep.subr.mxu0 %v105
    %604 = vmatpush1.xpose.msra.mxu0 %v104
    %605 = vmatprep.subr.mxu0 %v117
    %606 = vmatpush1.xpose.msra.mxu0 %v116
    %607 = vmatprep.subr.mxu0 %v129
    %608 = vmatpush1.xpose.msra.mxu0 %v128
    %609 = vmatprep.subr.mxu0 %v141
    %610 = vmatpush1.xpose.msra.mxu0 %v140
    %611 = vmatprep.subr.mxu0 %v153
    %612 = vmatpush1.xpose.msra.mxu0 %v152
    %613 = vmatprep.subr.mxu0 %v165
    %614 = vmatpush1.xpose.msra.mxu0 %v164
    %615 = vmatprep.subr.mxu0 %v177
    %616 = vmatpush1.xpose.msra.mxu0 %v176
    %617 = vmatprep.subr.mxu0 %v189
    %618 = vmatpush1.xpose.msra.mxu0 %v188
    %619 = vmatprep.subr.mxu0 %v201
    %620 = vmatpush1.xpose.msra.mxu0 %v200
    %621 = vmatprep.subr.mxu0 %v213
    %622 = vmatpush1.xpose.msra.mxu0 %v212
    %623 = vmatprep.subr.mxu0 %v225
    %624 = vmatpush1.xpose.msra.mxu0 %v224
    %625 = vmatprep.subr.mxu0 %v237
    %626 = vmatpush1.xpose.msra.mxu0 %v236
    %627 = vmatprep.subr.mxu0 %v249
    %628 = vmatpush1.xpose.msra.mxu0 %v248
    %629 = vmatprep.subr.mxu0 %v261
    %630 = vmatpush1.xpose.msra.mxu0 %v260
    %631 = vmatprep.subr.mxu0 %v273
    %632 = vmatpush1.xpose.msra.mxu0 %v272
    %633 = vmatprep.subr.mxu0 %v285
    %634 = vmatpush1.xpose.msra.mxu0 %v284
    %635 = vmatprep.subr.mxu0 %v297
    %636 = vmatpush1.xpose.msra.mxu0 %v296
    %637 = vmatprep.subr.mxu0 %v309
    %638 = vmatpush1.xpose.msra.mxu0 %v308
    %639 = vmatprep.subr.mxu0 %v321
    %640 = vmatpush1.xpose.msra.mxu0 %v320
    %641 = vmatprep.subr.mxu0 %v333
    %642 = vmatpush1.xpose.msra.mxu0 %v332
    %643 = vmatprep.subr.mxu0 %v345
    %644 = vmatpush1.xpose.msra.mxu0 %v344
    %645 = vmatprep.subr.mxu0 %v357
    %646 = vmatpush1.xpose.msra.mxu0 %v356
    %647 = vmatprep.subr.mxu0 %v369
    %648 = vmatpush1.xpose.msra.mxu0 %v368
    %649 = vmatprep.subr.mxu0 %v381
    %650 = vmatpush1.xpose.msra.mxu0 %v380
    %651 = vmatprep.subr.mxu0 %v393
    %652 = vmatpush1.xpose.msra.mxu0 %v392
    %653 = vmatprep.mubr.f32.mxu0 %v409
    %654 = vmatmul.mubr.f32.gmra.mrb[0].mxu0 %v13
    %v655 = vpop.f32.mrb[0].mxu0
    %v656 = vadd.f32 %v585, %v655
    %v657 = vpop.f32.mrb[0].mxu0
    %v658 = vadd.f32 %v587, %v657
    %659 = vdwg.mxu0
    %660 = vmatprep.subr.mxu0 %v23
    %661 = vmatpush1.xpose.msra.mxu0 %v22
    %662 = vmatprep.subr.mxu0 %v35
    %663 = vmatpush1.xpose.msra.mxu0 %v34
    %664 = vmatprep.subr.mxu0 %v47
    %665 = vmatpush1.xpose.msra.mxu0 %v46
    %666 = vmatprep.subr.mxu0 %v59
    %667 = vmatpush1.xpose.msra.mxu0 %v58
    %668 = vmatprep.subr.mxu0 %v71
    %669 = vmatpush1.xpose.msra.mxu0 %v70
    %670 = vmatprep.subr.mxu0 %v83
    %671 = vmatpush1.xpose.msra.mxu0 %v82
    %672 = vmatprep.subr.mxu0 %v95
    %673 = vmatpush1.xpose.msra.mxu0 %v94
    %674 = vmatprep.subr.mxu0 %v107
    %675 = vmatpush1.xpose.msra.mxu0 %v106
    %676 = vmatprep.subr.mxu0 %v119
    %677 = vmatpush1.xpose.msra.mxu0 %v118
    %678 = vmatprep.subr.mxu0 %v131
    %679 = vmatpush1.xpose.msra.mxu0 %v130
    %680 = vmatprep.subr.mxu0 %v143
    %681 = vmatpush1.xpose.msra.mxu0 %v142
    %682 = vmatprep.subr.mxu0 %v155
    %683 = vmatpush1.xpose.msra.mxu0 %v154
    %684 = vmatprep.subr.mxu0 %v167
    %685 = vmatpush1.xpose.msra.mxu0 %v166
    %686 = vmatprep.subr.mxu0 %v179
    %687 = vmatpush1.xpose.msra.mxu0 %v178
    %688 = vmatprep.subr.mxu0 %v191
    %689 = vmatpush1.xpose.msra.mxu0 %v190
    %690 = vmatprep.subr.mxu0 %v203
    %691 = vmatpush1.xpose.msra.mxu0 %v202
    %692 = vmatprep.subr.mxu0 %v215
    %693 = vmatpush1.xpose.msra.mxu0 %v214
    %694 = vmatprep.subr.mxu0 %v227
    %695 = vmatpush1.xpose.msra.mxu0 %v226
    %696 = vmatprep.subr.mxu0 %v239
    %697 = vmatpush1.xpose.msra.mxu0 %v238
    %698 = vmatprep.subr.mxu0 %v251
    %699 = vmatpush1.xpose.msra.mxu0 %v250
    %700 = vmatprep.subr.mxu0 %v263
    %701 = vmatpush1.xpose.msra.mxu0 %v262
    %702 = vmatprep.subr.mxu0 %v275
    %703 = vmatpush1.xpose.msra.mxu0 %v274
    %704 = vmatprep.subr.mxu0 %v287
    %705 = vmatpush1.xpose.msra.mxu0 %v286
    %706 = vmatprep.subr.mxu0 %v299
    %707 = vmatpush1.xpose.msra.mxu0 %v298
    %708 = vmatprep.subr.mxu0 %v311
    %709 = vmatpush1.xpose.msra.mxu0 %v310
    %710 = vmatprep.subr.mxu0 %v323
    %711 = vmatpush1.xpose.msra.mxu0 %v322
    %712 = vmatprep.subr.mxu0 %v335
    %713 = vmatpush1.xpose.msra.mxu0 %v334
    %714 = vmatprep.subr.mxu0 %v347
    %715 = vmatpush1.xpose.msra.mxu0 %v346
    %716 = vmatprep.subr.mxu0 %v359
    %717 = vmatpush1.xpose.msra.mxu0 %v358
    %718 = vmatprep.subr.mxu0 %v371
    %719 = vmatpush1.xpose.msra.mxu0 %v370
    %720 = vmatprep.subr.mxu0 %v383
    %721 = vmatpush1.xpose.msra.mxu0 %v382
    %722 = vmatprep.subr.mxu0 %v395
    %723 = vmatpush1.xpose.msra.mxu0 %v394
    %724 = vmatprep.mubr.f32.mxu0 %v410
    %725 = vmatmul.mubr.f32.gmra.mrb[0].mxu0 %v14
    %v726 = vpop.f32.mrb[0].mxu0
    %v727 = vadd.f32 %v656, %v726
    %v728 = vpop.f32.mrb[0].mxu0
    %v729 = vadd.f32 %v658, %v728
    %730 = vdwg.mxu0
    %731 = vmatprep.subr.mxu0 %v25
    %732 = vmatpush1.xpose.msra.mxu0 %v24
    %733 = vmatprep.subr.mxu0 %v37
    %734 = vmatpush1.xpose.msra.mxu0 %v36
    %735 = vmatprep.subr.mxu0 %v49
    %736 = vmatpush1.xpose.msra.mxu0 %v48
    %737 = vmatprep.subr.mxu0 %v61
    %738 = vmatpush1.xpose.msra.mxu0 %v60
    %739 = vmatprep.subr.mxu0 %v73
    %740 = vmatpush1.xpose.msra.mxu0 %v72
    %741 = vmatprep.subr.mxu0 %v85
    %742 = vmatpush1.xpose.msra.mxu0 %v84
    %743 = vmatprep.subr.mxu0 %v97
    %744 = vmatpush1.xpose.msra.mxu0 %v96
    %745 = vmatprep.subr.mxu0 %v109
    %746 = vmatpush1.xpose.msra.mxu0 %v108
    %747 = vmatprep.subr.mxu0 %v121
    %748 = vmatpush1.xpose.msra.mxu0 %v120
    %749 = vmatprep.subr.mxu0 %v133
    %750 = vmatpush1.xpose.msra.mxu0 %v132
    %751 = vmatprep.subr.mxu0 %v145
    %752 = vmatpush1.xpose.msra.mxu0 %v144
    %753 = vmatprep.subr.mxu0 %v157
    %754 = vmatpush1.xpose.msra.mxu0 %v156
    %755 = vmatprep.subr.mxu0 %v169
    %756 = vmatpush1.xpose.msra.mxu0 %v168
    %757 = vmatprep.subr.mxu0 %v181
    %758 = vmatpush1.xpose.msra.mxu0 %v180
    %759 = vmatprep.subr.mxu0 %v193
    %760 = vmatpush1.xpose.msra.mxu0 %v192
    %761 = vmatprep.subr.mxu0 %v205
    %762 = vmatpush1.xpose.msra.mxu0 %v204
    %763 = vmatprep.subr.mxu0 %v217
    %764 = vmatpush1.xpose.msra.mxu0 %v216
    %765 = vmatprep.subr.mxu0 %v229
    %766 = vmatpush1.xpose.msra.mxu0 %v228
    %767 = vmatprep.subr.mxu0 %v241
    %768 = vmatpush1.xpose.msra.mxu0 %v240
    %769 = vmatprep.subr.mxu0 %v253
    %770 = vmatpush1.xpose.msra.mxu0 %v252
    %771 = vmatprep.subr.mxu0 %v265
    %772 = vmatpush1.xpose.msra.mxu0 %v264
    %773 = vmatprep.subr.mxu0 %v277
    %774 = vmatpush1.xpose.msra.mxu0 %v276
    %775 = vmatprep.subr.mxu0 %v289
    %776 = vmatpush1.xpose.msra.mxu0 %v288
    %777 = vmatprep.subr.mxu0 %v301
    %778 = vmatpush1.xpose.msra.mxu0 %v300
    %779 = vmatprep.subr.mxu0 %v313
    %780 = vmatpush1.xpose.msra.mxu0 %v312
    %781 = vmatprep.subr.mxu0 %v325
    %782 = vmatpush1.xpose.msra.mxu0 %v324
    %783 = vmatprep.subr.mxu0 %v337
    %784 = vmatpush1.xpose.msra.mxu0 %v336
    %785 = vmatprep.subr.mxu0 %v349
    %786 = vmatpush1.xpose.msra.mxu0 %v348
    %787 = vmatprep.subr.mxu0 %v361
    %788 = vmatpush1.xpose.msra.mxu0 %v360
    %789 = vmatprep.subr.mxu0 %v373
    %790 = vmatpush1.xpose.msra.mxu0 %v372
    %791 = vmatprep.subr.mxu0 %v385
    %792 = vmatpush1.xpose.msra.mxu0 %v384
    %793 = vmatprep.subr.mxu0 %v397
    %794 = vmatpush1.xpose.msra.mxu0 %v396
    %795 = vmatprep.mubr.f32.mxu0 %v411
    %796 = vmatmul.mubr.f32.gmra.mrb[0].mxu0 %v15
    %v797 = vpop.f32.mrb[0].mxu0
    %v798 = vadd.f32 %v727, %v797
    %v799 = vpop.f32.mrb[0].mxu0
    %v800 = vadd.f32 %v729, %v799
    %801 = vdwg.mxu0
    %802 = vmatprep.subr.mxu0 %v27
    %803 = vmatpush1.xpose.msra.mxu0 %v26
    %804 = vmatprep.subr.mxu0 %v39
    %805 = vmatpush1.xpose.msra.mxu0 %v38
    %806 = vmatprep.subr.mxu0 %v51
    %807 = vmatpush1.xpose.msra.mxu0 %v50
    %808 = vmatprep.subr.mxu0 %v63
    %809 = vmatpush1.xpose.msra.mxu0 %v62
    %810 = vmatprep.subr.mxu0 %v75
    %811 = vmatpush1.xpose.msra.mxu0 %v74
    %812 = vmatprep.subr.mxu0 %v87
    %813 = vmatpush1.xpose.msra.mxu0 %v86
    %814 = vmatprep.subr.mxu0 %v99
    %815 = vmatpush1.xpose.msra.mxu0 %v98
    %816 = vmatprep.subr.mxu0 %v111
    %817 = vmatpush1.xpose.msra.mxu0 %v110
    %818 = vmatprep.subr.mxu0 %v123
    %819 = vmatpush1.xpose.msra.mxu0 %v122
    %820 = vmatprep.subr.mxu0 %v135
    %821 = vmatpush1.xpose.msra.mxu0 %v134
    %822 = vmatprep.subr.mxu0 %v147
    %823 = vmatpush1.xpose.msra.mxu0 %v146
    %824 = vmatprep.subr.mxu0 %v159
    %825 = vmatpush1.xpose.msra.mxu0 %v158
    %826 = vmatprep.subr.mxu0 %v171
    %827 = vmatpush1.xpose.msra.mxu0 %v170
    %828 = vmatprep.subr.mxu0 %v183
    %829 = vmatpush1.xpose.msra.mxu0 %v182
    %830 = vmatprep.subr.mxu0 %v195
    %831 = vmatpush1.xpose.msra.mxu0 %v194
    %832 = vmatprep.subr.mxu0 %v207
    %833 = vmatpush1.xpose.msra.mxu0 %v206
    %834 = vmatprep.subr.mxu0 %v219
    %835 = vmatpush1.xpose.msra.mxu0 %v218
    %836 = vmatprep.subr.mxu0 %v231
    %837 = vmatpush1.xpose.msra.mxu0 %v230
    %838 = vmatprep.subr.mxu0 %v243
    %839 = vmatpush1.xpose.msra.mxu0 %v242
    %840 = vmatprep.subr.mxu0 %v255
    %841 = vmatpush1.xpose.msra.mxu0 %v254
    %842 = vmatprep.subr.mxu0 %v267
    %843 = vmatpush1.xpose.msra.mxu0 %v266
    %844 = vmatprep.subr.mxu0 %v279
    %845 = vmatpush1.xpose.msra.mxu0 %v278
    %846 = vmatprep.subr.mxu0 %v291
    %847 = vmatpush1.xpose.msra.mxu0 %v290
    %848 = vmatprep.subr.mxu0 %v303
    %849 = vmatpush1.xpose.msra.mxu0 %v302
    %850 = vmatprep.subr.mxu0 %v315
    %851 = vmatpush1.xpose.msra.mxu0 %v314
    %852 = vmatprep.subr.mxu0 %v327
    %853 = vmatpush1.xpose.msra.mxu0 %v326
    %854 = vmatprep.subr.mxu0 %v339
    %855 = vmatpush1.xpose.msra.mxu0 %v338
    %856 = vmatprep.subr.mxu0 %v351
    %857 = vmatpush1.xpose.msra.mxu0 %v350
    %858 = vmatprep.subr.mxu0 %v363
    %859 = vmatpush1.xpose.msra.mxu0 %v362
    %860 = vmatprep.subr.mxu0 %v375
    %861 = vmatpush1.xpose.msra.mxu0 %v374
    %862 = vmatprep.subr.mxu0 %v387
    %863 = vmatpush1.xpose.msra.mxu0 %v386
    %864 = vmatprep.subr.mxu0 %v399
    %865 = vmatpush1.xpose.msra.mxu0 %v398
    %866 = vmatprep.mubr.f32.mxu0 %v412
    %867 = vmatmul.mubr.f32.gmra.mrb[0].mxu0 %v16
    %v868 = vpop.f32.mrb[0].mxu0
    %v869 = vadd.f32 %v798, %v868
    %v870 = vpop.f32.mrb[0].mxu0
    %v871 = vadd.f32 %v800, %v870
    %872 = vdwg.mxu0
    %873 = vmatprep.subr.mxu0 %v423
    %874 = vmatpush1.xpose.msra.mxu0 %v28
    %875 = vmatprep.subr.mxu0 %v426
    %876 = vmatpush1.xpose.msra.mxu0 %v40
    %877 = vmatprep.subr.mxu0 %v429
    %878 = vmatpush1.xpose.msra.mxu0 %v52
    %879 = vmatprep.subr.mxu0 %v432
    %880 = vmatpush1.xpose.msra.mxu0 %v64
    %881 = vmatprep.subr.mxu0 %v435
    %882 = vmatpush1.xpose.msra.mxu0 %v76
    %883 = vmatprep.subr.mxu0 %v438
    %884 = vmatpush1.xpose.msra.mxu0 %v88
    %885 = vmatprep.subr.mxu0 %v441
    %886 = vmatpush1.xpose.msra.mxu0 %v100
    %887 = vmatprep.subr.mxu0 %v444
    %888 = vmatpush1.xpose.msra.mxu0 %v112
    %889 = vmatprep.subr.mxu0 %v447
    %890 = vmatpush1.xpose.msra.mxu0 %v124
    %891 = vmatprep.subr.mxu0 %v450
    %892 = vmatpush1.xpose.msra.mxu0 %v136
    %893 = vmatprep.subr.mxu0 %v453
    %894 = vmatpush1.xpose.msra.mxu0 %v148
    %895 = vmatprep.subr.mxu0 %v456
    %896 = vmatpush1.xpose.msra.mxu0 %v160
    %897 = vmatprep.subr.mxu0 %v459
    %898 = vmatpush1.xpose.msra.mxu0 %v172
    %899 = vmatprep.subr.mxu0 %v462
    %900 = vmatpush1.xpose.msra.mxu0 %v184
    %901 = vmatprep.subr.mxu0 %v465
    %902 = vmatpush1.xpose.msra.mxu0 %v196
    %903 = vmatprep.subr.mxu0 %v468
    %904 = vmatpush1.xpose.msra.mxu0 %v208
    %905 = vmatprep.subr.mxu0 %v471
    %906 = vmatpush1.xpose.msra.mxu0 %v220
    %907 = vmatprep.subr.mxu0 %v474
    %908 = vmatpush1.xpose.msra.mxu0 %v232
    %909 = vmatprep.subr.mxu0 %v477
    %910 = vmatpush1.xpose.msra.mxu0 %v244
    %911 = vmatprep.subr.mxu0 %v480
    %912 = vmatpush1.xpose.msra.mxu0 %v256
    %913 = vmatprep.subr.mxu0 %v483
    %914 = vmatpush1.xpose.msra.mxu0 %v268
    %915 = vmatprep.subr.mxu0 %v486
    %916 = vmatpush1.xpose.msra.mxu0 %v280
    %917 = vmatprep.subr.mxu0 %v489
    %918 = vmatpush1.xpose.msra.mxu0 %v292
    %919 = vmatprep.subr.mxu0 %v492
    %920 = vmatpush1.xpose.msra.mxu0 %v304
    %921 = vmatprep.subr.mxu0 %v495
    %922 = vmatpush1.xpose.msra.mxu0 %v316
    %923 = vmatprep.subr.mxu0 %v498
    %924 = vmatpush1.xpose.msra.mxu0 %v328
    %925 = vmatprep.subr.mxu0 %v501
    %926 = vmatpush1.xpose.msra.mxu0 %v340
    %927 = vmatprep.subr.mxu0 %v504
    %928 = vmatpush1.xpose.msra.mxu0 %v352
    %929 = vmatprep.subr.mxu0 %v507
    %930 = vmatpush1.xpose.msra.mxu0 %v364
    %931 = vmatprep.subr.mxu0 %v510
    %932 = vmatpush1.xpose.msra.mxu0 %v376
    %933 = vmatprep.subr.mxu0 %v513
    %934 = vmatpush1.xpose.msra.mxu0 %v388
    %935 = vmatprep.subr.mxu0 %v516
    %936 = vmatpush1.xpose.msra.mxu0 %v400
    %937 = vmatprep.mubr.f32.mxu0 %v420
    %938 = vmatmul.mubr.f32.gmra.mrb[0].mxu0 %v17
    %v939 = vpop.f32.mrb[0].mxu0
    %v940 = vadd.f32 %v869, %v939
    %v941 = vpop.f32.mrb[0].mxu0
    %v942 = vadd.f32 %v871, %v941
    %943 = vdwg.mxu0
    %v946 = vcombine.low %v940, %v942
    %vm948 = vcmask 1043456
    %vm949 = vcmask 998404
    %vm950 = vmor %vm949, %vm948
    %951 = vst.msk [vmem:[#allocation2] sm:$0xff] %vm950, %v946
    // Predicated region
    $region10: #{tpu_custom_call.1} parent=1 // pred_check
      _
    $region11: #{tpu_custom_call.1} parent=1 // pred_check_branch
      %953 = sbr.rel (0) target = $region13
    $region12: #{tpu_custom_call.1} parent=1 // pred_region
      %s955 = ssub.s32 128, 128
      %956 = vsyncadd [#allocation3], %s955
      %s958 = sshll.u32 [#allocation2], 4
      %s959 = int_to_ptr.vmem [resolvable:$true] %s958
      %961 = dma.vmem_to_hbm [thread:$0]  %s959, 128, %s2, [#allocation3]
    $region13: #{tpu_custom_call.1} parent=1 // pred_fallthru
      _
    // Predicated region
    $region14: #{tpu_custom_call.1} parent=1 // pred_check
      _
    $region15: #{tpu_custom_call.1} parent=1 // pred_check_branch
      %963 = sbr.rel (0) target = $region17
    $region16: #{tpu_custom_call.1} parent=1 // pred_region
      %964 = dma.done [#allocation3], 128
    $region17: #{tpu_custom_call.1} parent=1 // pred_fallthru
      _
    %965 = vsyncpa [#allocation3], 1

</llo_original>
